<compile_context>
chip_gen: v7x
topology: tpu7x:2x2x1
jax: 0.10.0
libtpu: 0.0.40
codegen_flags: <defaults>
</compile_context>

<pallas_src>
import jax
import jax.numpy as jnp
from jax.experimental import pallas as pl
from jax.experimental.pallas import tpu as pltpu

LN_EPS = 1e-5  # nn.LayerNorm default eps


def _round_up(x, m):
    return (x + m - 1) // m * m


# --------------------------------------------------------------------------- #
# Parameter init (mirrors the PyTorch module structure; weights pre-transposed
# to [in_features, out_features] so the kernel computes x @ W + b).
# --------------------------------------------------------------------------- #
def init_raw_params(key, d_in, hidden, latent):
    keys = iter(jax.random.split(key, 64))

    def lin(i, o):
        w = jax.random.normal(next(keys), (i, o), jnp.float32) * (1.0 / jnp.sqrt(i))
        b = jax.random.normal(next(keys), (1, o), jnp.float32) * 0.01
        return w, b

    def attn(h):
        wq, bq = lin(h, h)   # q/k projections exist in the module but are
        wk, bk = lin(h, h)   # provably unused for seq_len==1 (softmax == 1.0).
        wv, bv = lin(h, h)
        wo, bo = lin(h, h)
        ff1_w, ff1_b = lin(h, 4 * h)
        ff2_w, ff2_b = lin(4 * h, h)
        return dict(wq=wq, bq=bq, wk=wk, bk=bk, wv=wv, bv=bv, wo=wo, bo=bo,
                    ln1_g=jnp.ones((1, h), jnp.float32),
                    ln1_b=jnp.zeros((1, h), jnp.float32),
                    ff1_w=ff1_w, ff1_b=ff1_b, ff2_w=ff2_w, ff2_b=ff2_b,
                    ln2_g=jnp.ones((1, h), jnp.float32),
                    ln2_b=jnp.zeros((1, h), jnp.float32))

    raw = {}
    raw["enc_fc1_w"], raw["enc_fc1_b"] = lin(d_in, hidden)
    raw["enc_attn"] = attn(hidden)
    raw["enc_fc2_w"], raw["enc_fc2_b"] = lin(hidden, latent)
    raw["dec_fc1_w"], raw["dec_fc1_b"] = lin(latent, hidden)
    raw["dec_attn"] = attn(hidden)
    raw["dec_fc2_w"], raw["dec_fc2_b"] = lin(hidden, d_in)
    return raw


# --------------------------------------------------------------------------- #
# Host-side fusion + packing into two lane-padded slabs.
# --------------------------------------------------------------------------- #
def pack_params(raw):
    def fuse_attn(p):
        # seq_len == 1  =>  softmax over the single key == 1.0 exactly, so
        # MHA(x,x,x) == (x @ Wv + bv) @ Wo + bo == x @ Wvo + bvo.
        wvo = jnp.dot(p["wv"], p["wo"], precision=jax.lax.Precision.HIGHEST)
        bvo = jnp.dot(p["bv"], p["wo"], precision=jax.lax.Precision.HIGHEST) + p["bo"]
        return wvo, bvo

    enc_wvo, enc_bvo = fuse_attn(raw["enc_attn"])
    dec_wvo, dec_bvo = fuse_attn(raw["dec_attn"])

    weights = [
        ("enc_fc1", raw["enc_fc1_w"]), ("enc_wvo", enc_wvo),
        ("enc_ff1", raw["enc_attn"]["ff1_w"]), ("enc_ff2", raw["enc_attn"]["ff2_w"]),
        ("enc_fc2", raw["enc_fc2_w"]),
        ("dec_fc1", raw["dec_fc1_w"]), ("dec_wvo", dec_wvo),
        ("dec_ff1", raw["dec_attn"]["ff1_w"]), ("dec_ff2", raw["dec_attn"]["ff2_w"]),
        ("dec_fc2", raw["dec_fc2_w"]),
    ]
    vecs = [
        ("enc_fc1_b", raw["enc_fc1_b"]), ("enc_bvo", enc_bvo),
        ("enc_ln1_g", raw["enc_attn"]["ln1_g"]), ("enc_ln1_b", raw["enc_attn"]["ln1_b"]),
        ("enc_ff1_b", raw["enc_attn"]["ff1_b"]), ("enc_ff2_b", raw["enc_attn"]["ff2_b"]),
        ("enc_ln2_g", raw["enc_attn"]["ln2_g"]), ("enc_ln2_b", raw["enc_attn"]["ln2_b"]),
        ("enc_fc2_b", raw["enc_fc2_b"]),
        ("dec_fc1_b", raw["dec_fc1_b"]), ("dec_bvo", dec_bvo),
        ("dec_ln1_g", raw["dec_attn"]["ln1_g"]), ("dec_ln1_b", raw["dec_attn"]["ln1_b"]),
        ("dec_ff1_b", raw["dec_attn"]["ff1_b"]), ("dec_ff2_b", raw["dec_attn"]["ff2_b"]),
        ("dec_ln2_g", raw["dec_attn"]["ln2_g"]), ("dec_ln2_b", raw["dec_attn"]["ln2_b"]),
        ("dec_fc2_b", raw["dec_fc2_b"]),
    ]

    lane = _round_up(max(max(w.shape[1] for _, w in weights),
                         max(v.shape[1] for _, v in vecs)), 128)

    # Weight slab: zero-pad each weight to `lane` columns, stack along rows
    # (each block's row count padded to a multiple of 8 for sublane alignment).
    w_blocks, w_layout, off = [], {}, 0
    for name, w in weights:
        rin, cout = w.shape
        rpad = _round_up(rin, 8)
        w_blocks.append(jnp.pad(w, ((0, rpad - rin), (0, lane - cout))))
        w_layout[name] = (off, rin, cout)
        off += rpad
    w_slab = jnp.concatenate(w_blocks, axis=0).astype(jnp.float32)

    # Bias / LayerNorm slab: one 128-lane row per vector.
    b_rows, b_layout = [], {}
    for row, (name, v) in enumerate(vecs):
        cout = v.shape[1]
        b_rows.append(jnp.pad(v, ((0, 0), (0, lane - cout))))
        b_layout[name] = (row, cout)
    n_rows = _round_up(len(vecs), 8)
    b_rows.append(jnp.zeros((n_rows - len(vecs), lane), jnp.float32))
    b_slab = jnp.concatenate(b_rows, axis=0).astype(jnp.float32)

    return w_slab, b_slab, w_layout, b_layout


# --------------------------------------------------------------------------- #
# Kernel (closed over the static slab layouts).
# --------------------------------------------------------------------------- #
def _make_kernel(w_layout, b_layout, d_in, latent, out_w):
    def kernel(x_ref, w_ref, b_ref, out_ref):
        # Point-of-use static slab reads keep vreg live ranges short.
        def W(name):
            off, rin, cout = w_layout[name]
            return w_ref[off:off + rin, :cout]

        def V(name):
            row, cout = b_layout[name]
            return b_ref[row:row + 1, :cout]

        def linear(h, name, bname=None):
            b = V(name + "_b" if bname is None else bname)
            return jnp.dot(h, W(name), preferred_element_type=jnp.float32) + b

        def layernorm(h, gname, bname):
            mu = jnp.mean(h, axis=-1, keepdims=True)
            var = jnp.mean((h - mu) ** 2, axis=-1, keepdims=True)  # biased (PyTorch)
            return (h - mu) * jax.lax.rsqrt(var + LN_EPS) * V(gname) + V(bname)

        def attn_block(h, p):
            # Single-token MHA: softmax over one key == 1.0 (exact), so the
            # attention output is just the fused value/output projection.
            attn_out = linear(h, p + "_wvo", p + "_bvo")
            h = layernorm(h + attn_out, p + "_ln1_g", p + "_ln1_b")
            ff = linear(jnp.maximum(linear(h, p + "_ff1"), 0.0), p + "_ff2")
            return layernorm(h + ff, p + "_ln2_g", p + "_ln2_b")

        x = x_ref[...]
        # ---- encode ----
        h = jnp.maximum(linear(x, "enc_fc1"), 0.0)
        h = attn_block(h, "enc")
        z = linear(h, "enc_fc2")
        # ---- decode ----
        d = jnp.maximum(linear(z, "dec_fc1"), 0.0)
        d = attn_block(d, "dec")
        recon = linear(d, "dec_fc2")

        # One lane-dense 128-wide store: [recon | z | zero-pad].
        pieces = [recon, z]
        pad = out_w - (d_in + latent)
        if pad > 0:
            pieces.append(jnp.zeros((x.shape[0], pad), jnp.float32))
        out_ref[...] = jnp.concatenate(pieces, axis=-1)

    return kernel


# --------------------------------------------------------------------------- #
# Wrapper (returns (x_recon_logits, None, z) like the PyTorch module, task='recon').
# --------------------------------------------------------------------------- #
def attention_autoencoder_forward(x, w_slab, b_slab, w_layout, b_layout, latent):
    B, d_in = x.shape
    out_w = _round_up(d_in + latent, 128)

    # Split the batch into >=2 grid steps (rows multiple of 8) when possible so
    # dimension_semantics=('parallel',) can shard across v7x's two TensorCores.
    tb = B // 2 if (B >= 16 and B % 16 == 0) else B
    grid = (B // tb,)

    kernel = _make_kernel(w_layout, b_layout, d_in, latent, out_w)

    packed = pl.pallas_call(
        kernel,
        out_shape=jax.ShapeDtypeStruct((B, out_w), jnp.float32),
        grid_spec=pltpu.PrefetchScalarGridSpec(
            num_scalar_prefetch=0,
            grid=grid,
            in_specs=[
                pl.BlockSpec((tb, d_in), lambda i: (i, 0)),
                pl.BlockSpec(w_slab.shape, lambda i: (0, 0)),
                pl.BlockSpec(b_slab.shape, lambda i: (0, 0)),
            ],
            out_specs=pl.BlockSpec((tb, out_w), lambda i: (i, 0)),
        ),
        compiler_params=pltpu.CompilerParams(
            dimension_semantics=("parallel",),
            # Tiny footprint today; explicit cap keeps behaviour stable if dims
            # scale up (v7x: 64 MiB physical VMEM vs 128 MiB on v5e/v6e).
            vmem_limit_bytes=32 * 1024 * 1024,
        ),
    )(x, w_slab, b_slab)

    recon = packed[:, :d_in]
    z = packed[:, d_in:d_in + latent]
    return recon, None, z


# --------------------------------------------------------------------------- #
# Pure-JAX reference (unfused, explicit single-token attention) for validation.
# --------------------------------------------------------------------------- #
def _reference_forward(x, raw):
    hp = jax.lax.Precision.HIGHEST

    def ln(h, g, b):
        mu = h.mean(-1, keepdims=True)
        var = ((h - mu) ** 2).mean(-1, keepdims=True)
        return (h - mu) / jnp.sqrt(var + LN_EPS) * g + b

    def attn_block(h, p):
        v = jnp.dot(h, p["wv"], precision=hp) + p["bv"]
        attn_out = jnp.dot(v, p["wo"], precision=hp) + p["bo"]   # softmax(1 key) == 1
        h = ln(h + attn_out, p["ln1_g"], p["ln1_b"])
        hid = jnp.maximum(jnp.dot(h, p["ff1_w"], precision=hp) + p["ff1_b"], 0.0)
        ff = jnp.dot(hid, p["ff2_w"], precision=hp) + p["ff2_b"]
        return ln(h + ff, p["ln2_g"], p["ln2_b"])

    h = jnp.maximum(jnp.dot(x, raw["enc_fc1_w"], precision=hp) + raw["enc_fc1_b"], 0.0)
    h = attn_block(h, raw["enc_attn"])
    z = jnp.dot(h, raw["enc_fc2_w"], precision=hp) + raw["enc_fc2_b"]
    d = jnp.maximum(jnp.dot(z, raw["dec_fc1_w"], precision=hp) + raw["dec_fc1_b"], 0.0)
    d = attn_block(d, raw["dec_attn"])
    recon = jnp.dot(d, raw["dec_fc2_w"], precision=hp) + raw["dec_fc2_b"]
    return recon, z


if __name__ == "__main__":
    B, D_IN, HIDDEN, LATENT = 8, 64, 32, 16
    key = jax.random.PRNGKey(0)
    pkey, xkey = jax.random.split(key)

    raw = init_raw_params(pkey, D_IN, HIDDEN, LATENT)
    w_slab, b_slab, w_layout, b_layout = pack_params(raw)
    x = jax.random.normal(xkey, (B, D_IN), jnp.float32)

    recon, cls_logits, z = attention_autoencoder_forward(
        x, w_slab, b_slab, w_layout, b_layout, LATENT)
    jax.block_until_ready((recon, z))

    assert recon.shape == (B, D_IN), recon.shape
    assert z.shape == (B, LATENT), z.shape
    assert cls_logits is None                      # task='recon' has no classifier
    assert bool(jnp.all(jnp.isfinite(recon))) and bool(jnp.all(jnp.isfinite(z)))

    # Sanity check against the unfused pure-JAX reference (loose tolerance to
    # allow for MXU f32 matmul precision differences vs XLA HIGHEST).
    ref_recon, ref_z = _reference_forward(x, raw)
    assert bool(jnp.allclose(recon, ref_recon, atol=2e-2, rtol=2e-2))
    assert bool(jnp.allclose(z, ref_z, atol=2e-2, rtol=2e-2))

    print("KERNEL_OK")
</pallas_src>

<mosaic_0001>
module attributes {stable_mosaic.version = 11 : i64} {
  func.func @kernel(%arg0: i32, %arg1: memref<8x64xf32, #tpu.memory_space<vmem>>, %arg2: memref<528x128xf32, #tpu.memory_space<vmem>>, %arg3: memref<24x128xf32, #tpu.memory_space<vmem>>, %arg4: memref<8x128xf32, #tpu.memory_space<vmem>>) attributes {dimension_semantics = [#tpu.dimension_semantics<parallel>], iteration_bounds = array<i64: 1>, scalar_prefetch = 0 : i64, scratch_operands = 0 : i64, tpu.core_type = #tpu.core_type<tc>, window_params = [{transform_indices = @transform_0, window_bounds = array<i64: 8, 64>}, {pipeline_mode = #tpu.pipeline_mode<synchronous>, transform_indices = @transform_1, window_bounds = array<i64: 528, 128>}, {pipeline_mode = #tpu.pipeline_mode<synchronous>, transform_indices = @transform_2, window_bounds = array<i64: 24, 128>}, {transform_indices = @transform_3, window_bounds = array<i64: 8, 128>}]} {
    %c0 = arith.constant 0 : index
    %c0_0 = arith.constant 0 : index
    %0 = vector.load %arg1[%c0, %c0_0] : memref<8x64xf32, #tpu.memory_space<vmem>>, vector<8x64xf32>
    %c0_1 = arith.constant 0 : index
    %c0_2 = arith.constant 0 : index
    %1 = vector.load %arg3[%c0_1, %c0_2] : memref<24x128xf32, #tpu.memory_space<vmem>>, vector<1x32xf32>
    %c0_3 = arith.constant 0 : index
    %c0_4 = arith.constant 0 : index
    %2 = vector.load %arg2[%c0_3, %c0_4] : memref<528x128xf32, #tpu.memory_space<vmem>>, vector<64x32xf32>
    %cst = arith.constant dense<0.000000e+00> : vector<8x32xf32>
    %3 = tpu.matmul %0, %2, %cst {dimension_numbers = #tpu.dot_dimension_numbers<[1], [0], [0], [1], [0, 0, 1, 1], [], []>} : vector<8x64xf32>, vector<64x32xf32>, vector<8x32xf32> -> vector<8x32xf32>
    %4 = vector.broadcast %1 : vector<1x32xf32> to vector<8x32xf32>
    %5 = arith.addf %3, %4 : vector<8x32xf32>
    %cst_5 = arith.constant 0.000000e+00 : f32
    %6 = vector.broadcast %cst_5 : f32 to vector<8x32xf32>
    %7 = arith.maximumf %5, %6 : vector<8x32xf32>
    %c1 = arith.constant 1 : index
    %c0_6 = arith.constant 0 : index
    %8 = vector.load %arg3[%c1, %c0_6] : memref<24x128xf32, #tpu.memory_space<vmem>>, vector<1x32xf32>
    %c64 = arith.constant 64 : index
    %c0_7 = arith.constant 0 : index
    %9 = vector.load %arg2[%c64, %c0_7] : memref<528x128xf32, #tpu.memory_space<vmem>>, vector<32x32xf32>
    %cst_8 = arith.constant dense<0.000000e+00> : vector<8x32xf32>
    %10 = tpu.matmul %7, %9, %cst_8 {dimension_numbers = #tpu.dot_dimension_numbers<[1], [0], [0], [1], [0, 0, 1, 1], [], []>} : vector<8x32xf32>, vector<32x32xf32>, vector<8x32xf32> -> vector<8x32xf32>
    %11 = vector.broadcast %8 : vector<1x32xf32> to vector<8x32xf32>
    %12 = arith.addf %10, %11 : vector<8x32xf32>
    %13 = arith.addf %7, %12 : vector<8x32xf32>
    %cst_9 = arith.constant dense<0.000000e+00> : vector<8xf32>
    %14 = vector.multi_reduction <add>, %13, %cst_9 [1] : vector<8x32xf32> to vector<8xf32>
    %15 = vector.shape_cast %14 : vector<8xf32> to vector<8x1xf32>
    %cst_10 = arith.constant 3.200000e+01 : f32
    %16 = vector.broadcast %cst_10 : f32 to vector<8x1xf32>
    %17 = arith.divf %15, %16 : vector<8x1xf32>
    %18 = vector.broadcast %17 : vector<8x1xf32> to vector<8x32xf32>
    %19 = arith.subf %13, %18 : vector<8x32xf32>
    %20 = arith.mulf %19, %19 : vector<8x32xf32>
    %cst_11 = arith.constant dense<0.000000e+00> : vector<8xf32>
    %21 = vector.multi_reduction <add>, %20, %cst_11 [1] : vector<8x32xf32> to vector<8xf32>
    %22 = vector.shape_cast %21 : vector<8xf32> to vector<8x1xf32>
    %cst_12 = arith.constant 3.200000e+01 : f32
    %23 = vector.broadcast %cst_12 : f32 to vector<8x1xf32>
    %24 = arith.divf %22, %23 : vector<8x1xf32>
    %25 = vector.broadcast %17 : vector<8x1xf32> to vector<8x32xf32>
    %26 = arith.subf %13, %25 : vector<8x32xf32>
    %cst_13 = arith.constant 9.99999974E-6 : f32
    %27 = vector.broadcast %cst_13 : f32 to vector<8x1xf32>
    %28 = arith.addf %24, %27 : vector<8x1xf32>
    %29 = math.rsqrt %28 : vector<8x1xf32>
    %30 = vector.broadcast %29 : vector<8x1xf32> to vector<8x32xf32>
    %31 = arith.mulf %26, %30 : vector<8x32xf32>
    %c2 = arith.constant 2 : index
    %c0_14 = arith.constant 0 : index
    %32 = vector.load %arg3[%c2, %c0_14] : memref<24x128xf32, #tpu.memory_space<vmem>>, vector<1x32xf32>
    %33 = vector.broadcast %32 : vector<1x32xf32> to vector<8x32xf32>
    %34 = arith.mulf %31, %33 : vector<8x32xf32>
    %c3 = arith.constant 3 : index
    %c0_15 = arith.constant 0 : index
    %35 = vector.load %arg3[%c3, %c0_15] : memref<24x128xf32, #tpu.memory_space<vmem>>, vector<1x32xf32>
    %36 = vector.broadcast %35 : vector<1x32xf32> to vector<8x32xf32>
    %37 = arith.addf %34, %36 : vector<8x32xf32>
    %c4 = arith.constant 4 : index
    %c0_16 = arith.constant 0 : index
    %38 = vector.load %arg3[%c4, %c0_16] : memref<24x128xf32, #tpu.memory_space<vmem>>, vector<1x128xf32>
    %c96 = arith.constant 96 : index
    %c0_17 = arith.constant 0 : index
    %39 = vector.load %arg2[%c96, %c0_17] : memref<528x128xf32, #tpu.memory_space<vmem>>, vector<32x128xf32>
    %cst_18 = arith.constant dense<0.000000e+00> : vector<8x128xf32>
    %40 = tpu.matmul %37, %39, %cst_18 {dimension_numbers = #tpu.dot_dimension_numbers<[1], [0], [0], [1], [0, 0, 1, 1], [], []>} : vector<8x32xf32>, vector<32x128xf32>, vector<8x128xf32> -> vector<8x128xf32>
    %41 = vector.broadcast %38 : vector<1x128xf32> to vector<8x128xf32>
    %42 = arith.addf %40, %41 : vector<8x128xf32>
    %cst_19 = arith.constant 0.000000e+00 : f32
    %43 = vector.broadcast %cst_19 : f32 to vector<8x128xf32>
    %44 = arith.maximumf %42, %43 : vector<8x128xf32>
    %c5 = arith.constant 5 : index
    %c0_20 = arith.constant 0 : index
    %45 = vector.load %arg3[%c5, %c0_20] : memref<24x128xf32, #tpu.memory_space<vmem>>, vector<1x32xf32>
    %c128 = arith.constant 128 : index
    %c0_21 = arith.constant 0 : index
    %46 = vector.load %arg2[%c128, %c0_21] : memref<528x128xf32, #tpu.memory_space<vmem>>, vector<128x32xf32>
    %cst_22 = arith.constant dense<0.000000e+00> : vector<8x32xf32>
    %47 = tpu.matmul %44, %46, %cst_22 {dimension_numbers = #tpu.dot_dimension_numbers<[1], [0], [0], [1], [0, 0, 1, 1], [], []>} : vector<8x128xf32>, vector<128x32xf32>, vector<8x32xf32> -> vector<8x32xf32>
    %48 = vector.broadcast %45 : vector<1x32xf32> to vector<8x32xf32>
    %49 = arith.addf %47, %48 : vector<8x32xf32>
    %50 = arith.addf %37, %49 : vector<8x32xf32>
    %cst_23 = arith.constant dense<0.000000e+00> : vector<8xf32>
    %51 = vector.multi_reduction <add>, %50, %cst_23 [1] : vector<8x32xf32> to vector<8xf32>
    %52 = vector.shape_cast %51 : vector<8xf32> to vector<8x1xf32>
    %cst_24 = arith.constant 3.200000e+01 : f32
    %53 = vector.broadcast %cst_24 : f32 to vector<8x1xf32>
    %54 = arith.divf %52, %53 : vector<8x1xf32>
    %55 = vector.broadcast %54 : vector<8x1xf32> to vector<8x32xf32>
    %56 = arith.subf %50, %55 : vector<8x32xf32>
    %57 = arith.mulf %56, %56 : vector<8x32xf32>
    %cst_25 = arith.constant dense<0.000000e+00> : vector<8xf32>
    %58 = vector.multi_reduction <add>, %57, %cst_25 [1] : vector<8x32xf32> to vector<8xf32>
    %59 = vector.shape_cast %58 : vector<8xf32> to vector<8x1xf32>
    %cst_26 = arith.constant 3.200000e+01 : f32
    %60 = vector.broadcast %cst_26 : f32 to vector<8x1xf32>
    %61 = arith.divf %59, %60 : vector<8x1xf32>
    %62 = vector.broadcast %54 : vector<8x1xf32> to vector<8x32xf32>
    %63 = arith.subf %50, %62 : vector<8x32xf32>
    %cst_27 = arith.constant 9.99999974E-6 : f32
    %64 = vector.broadcast %cst_27 : f32 to vector<8x1xf32>
    %65 = arith.addf %61, %64 : vector<8x1xf32>
    %66 = math.rsqrt %65 : vector<8x1xf32>
    %67 = vector.broadcast %66 : vector<8x1xf32> to vector<8x32xf32>
    %68 = arith.mulf %63, %67 : vector<8x32xf32>
    %c6 = arith.constant 6 : index
    %c0_28 = arith.constant 0 : index
    %69 = vector.load %arg3[%c6, %c0_28] : memref<24x128xf32, #tpu.memory_space<vmem>>, vector<1x32xf32>
    %70 = vector.broadcast %69 : vector<1x32xf32> to vector<8x32xf32>
    %71 = arith.mulf %68, %70 : vector<8x32xf32>
    %c7 = arith.constant 7 : index
    %c0_29 = arith.constant 0 : index
    %72 = vector.load %arg3[%c7, %c0_29] : memref<24x128xf32, #tpu.memory_space<vmem>>, vector<1x32xf32>
    %73 = vector.broadcast %72 : vector<1x32xf32> to vector<8x32xf32>
    %74 = arith.addf %71, %73 : vector<8x32xf32>
    %c8 = arith.constant 8 : index
    %c0_30 = arith.constant 0 : index
    %75 = vector.load %arg3[%c8, %c0_30] : memref<24x128xf32, #tpu.memory_space<vmem>>, vector<1x16xf32>
    %c256 = arith.constant 256 : index
    %c0_31 = arith.constant 0 : index
    %76 = vector.load %arg2[%c256, %c0_31] : memref<528x128xf32, #tpu.memory_space<vmem>>, vector<32x16xf32>
    %cst_32 = arith.constant dense<0.000000e+00> : vector<8x16xf32>
    %77 = tpu.matmul %74, %76, %cst_32 {dimension_numbers = #tpu.dot_dimension_numbers<[1], [0], [0], [1], [0, 0, 1, 1], [], []>} : vector<8x32xf32>, vector<32x16xf32>, vector<8x16xf32> -> vector<8x16xf32>
    %78 = vector.broadcast %75 : vector<1x16xf32> to vector<8x16xf32>
    %79 = arith.addf %77, %78 : vector<8x16xf32>
    %c9 = arith.constant 9 : index
    %c0_33 = arith.constant 0 : index
    %80 = vector.load %arg3[%c9, %c0_33] : memref<24x128xf32, #tpu.memory_space<vmem>>, vector<1x32xf32>
    %c288 = arith.constant 288 : index
    %c0_34 = arith.constant 0 : index
    %81 = vector.load %arg2[%c288, %c0_34] : memref<528x128xf32, #tpu.memory_space<vmem>>, vector<16x32xf32>
    %cst_35 = arith.constant dense<0.000000e+00> : vector<8x32xf32>
    %82 = tpu.matmul %79, %81, %cst_35 {dimension_numbers = #tpu.dot_dimension_numbers<[1], [0], [0], [1], [0, 0, 1, 1], [], []>} : vector<8x16xf32>, vector<16x32xf32>, vector<8x32xf32> -> vector<8x32xf32>
    %83 = vector.broadcast %80 : vector<1x32xf32> to vector<8x32xf32>
    %84 = arith.addf %82, %83 : vector<8x32xf32>
    %cst_36 = arith.constant 0.000000e+00 : f32
    %85 = vector.broadcast %cst_36 : f32 to vector<8x32xf32>
    %86 = arith.maximumf %84, %85 : vector<8x32xf32>
    %c10 = arith.constant 10 : index
    %c0_37 = arith.constant 0 : index
    %87 = vector.load %arg3[%c10, %c0_37] : memref<24x128xf32, #tpu.memory_space<vmem>>, vector<1x32xf32>
    %c304 = arith.constant 304 : index
    %c0_38 = arith.constant 0 : index
    %88 = vector.load %arg2[%c304, %c0_38] : memref<528x128xf32, #tpu.memory_space<vmem>>, vector<32x32xf32>
    %cst_39 = arith.constant dense<0.000000e+00> : vector<8x32xf32>
    %89 = tpu.matmul %86, %88, %cst_39 {dimension_numbers = #tpu.dot_dimension_numbers<[1], [0], [0], [1], [0, 0, 1, 1], [], []>} : vector<8x32xf32>, vector<32x32xf32>, vector<8x32xf32> -> vector<8x32xf32>
    %90 = vector.broadcast %87 : vector<1x32xf32> to vector<8x32xf32>
    %91 = arith.addf %89, %90 : vector<8x32xf32>
    %92 = arith.addf %86, %91 : vector<8x32xf32>
    %cst_40 = arith.constant dense<0.000000e+00> : vector<8xf32>
    %93 = vector.multi_reduction <add>, %92, %cst_40 [1] : vector<8x32xf32> to vector<8xf32>
    %94 = vector.shape_cast %93 : vector<8xf32> to vector<8x1xf32>
    %cst_41 = arith.constant 3.200000e+01 : f32
    %95 = vector.broadcast %cst_41 : f32 to vector<8x1xf32>
    %96 = arith.divf %94, %95 : vector<8x1xf32>
    %97 = vector.broadcast %96 : vector<8x1xf32> to vector<8x32xf32>
    %98 = arith.subf %92, %97 : vector<8x32xf32>
    %99 = arith.mulf %98, %98 : vector<8x32xf32>
    %cst_42 = arith.constant dense<0.000000e+00> : vector<8xf32>
    %100 = vector.multi_reduction <add>, %99, %cst_42 [1] : vector<8x32xf32> to vector<8xf32>
    %101 = vector.shape_cast %100 : vector<8xf32> to vector<8x1xf32>
    %cst_43 = arith.constant 3.200000e+01 : f32
    %102 = vector.broadcast %cst_43 : f32 to vector<8x1xf32>
    %103 = arith.divf %101, %102 : vector<8x1xf32>
    %104 = vector.broadcast %96 : vector<8x1xf32> to vector<8x32xf32>
    %105 = arith.subf %92, %104 : vector<8x32xf32>
    %cst_44 = arith.constant 9.99999974E-6 : f32
    %106 = vector.broadcast %cst_44 : f32 to vector<8x1xf32>
    %107 = arith.addf %103, %106 : vector<8x1xf32>
    %108 = math.rsqrt %107 : vector<8x1xf32>
    %109 = vector.broadcast %108 : vector<8x1xf32> to vector<8x32xf32>
    %110 = arith.mulf %105, %109 : vector<8x32xf32>
    %c11 = arith.constant 11 : index
    %c0_45 = arith.constant 0 : index
    %111 = vector.load %arg3[%c11, %c0_45] : memref<24x128xf32, #tpu.memory_space<vmem>>, vector<1x32xf32>
    %112 = vector.broadcast %111 : vector<1x32xf32> to vector<8x32xf32>
    %113 = arith.mulf %110, %112 : vector<8x32xf32>
    %c12 = arith.constant 12 : index
    %c0_46 = arith.constant 0 : index
    %114 = vector.load %arg3[%c12, %c0_46] : memref<24x128xf32, #tpu.memory_space<vmem>>, vector<1x32xf32>
    %115 = vector.broadcast %114 : vector<1x32xf32> to vector<8x32xf32>
    %116 = arith.addf %113, %115 : vector<8x32xf32>
    %c13 = arith.constant 13 : index
    %c0_47 = arith.constant 0 : index
    %117 = vector.load %arg3[%c13, %c0_47] : memref<24x128xf32, #tpu.memory_space<vmem>>, vector<1x128xf32>
    %c336 = arith.constant 336 : index
    %c0_48 = arith.constant 0 : index
    %118 = vector.load %arg2[%c336, %c0_48] : memref<528x128xf32, #tpu.memory_space<vmem>>, vector<32x128xf32>
    %cst_49 = arith.constant dense<0.000000e+00> : vector<8x128xf32>
    %119 = tpu.matmul %116, %118, %cst_49 {dimension_numbers = #tpu.dot_dimension_numbers<[1], [0], [0], [1], [0, 0, 1, 1], [], []>} : vector<8x32xf32>, vector<32x128xf32>, vector<8x128xf32> -> vector<8x128xf32>
    %120 = vector.broadcast %117 : vector<1x128xf32> to vector<8x128xf32>
    %121 = arith.addf %119, %120 : vector<8x128xf32>
    %cst_50 = arith.constant 0.000000e+00 : f32
    %122 = vector.broadcast %cst_50 : f32 to vector<8x128xf32>
    %123 = arith.maximumf %121, %122 : vector<8x128xf32>
    %c14 = arith.constant 14 : index
    %c0_51 = arith.constant 0 : index
    %124 = vector.load %arg3[%c14, %c0_51] : memref<24x128xf32, #tpu.memory_space<vmem>>, vector<1x32xf32>
    %c368 = arith.constant 368 : index
    %c0_52 = arith.constant 0 : index
    %125 = vector.load %arg2[%c368, %c0_52] : memref<528x128xf32, #tpu.memory_space<vmem>>, vector<128x32xf32>
    %cst_53 = arith.constant dense<0.000000e+00> : vector<8x32xf32>
    %126 = tpu.matmul %123, %125, %cst_53 {dimension_numbers = #tpu.dot_dimension_numbers<[1], [0], [0], [1], [0, 0, 1, 1], [], []>} : vector<8x128xf32>, vector<128x32xf32>, vector<8x32xf32> -> vector<8x32xf32>
    %127 = vector.broadcast %124 : vector<1x32xf32> to vector<8x32xf32>
    %128 = arith.addf %126, %127 : vector<8x32xf32>
    %129 = arith.addf %116, %128 : vector<8x32xf32>
    %cst_54 = arith.constant dense<0.000000e+00> : vector<8xf32>
    %130 = vector.multi_reduction <add>, %129, %cst_54 [1] : vector<8x32xf32> to vector<8xf32>
    %131 = vector.shape_cast %130 : vector<8xf32> to vector<8x1xf32>
    %cst_55 = arith.constant 3.200000e+01 : f32
    %132 = vector.broadcast %cst_55 : f32 to vector<8x1xf32>
    %133 = arith.divf %131, %132 : vector<8x1xf32>
    %134 = vector.broadcast %133 : vector<8x1xf32> to vector<8x32xf32>
    %135 = arith.subf %129, %134 : vector<8x32xf32>
    %136 = arith.mulf %135, %135 : vector<8x32xf32>
    %cst_56 = arith.constant dense<0.000000e+00> : vector<8xf32>
    %137 = vector.multi_reduction <add>, %136, %cst_56 [1] : vector<8x32xf32> to vector<8xf32>
    %138 = vector.shape_cast %137 : vector<8xf32> to vector<8x1xf32>
    %cst_57 = arith.constant 3.200000e+01 : f32
    %139 = vector.broadcast %cst_57 : f32 to vector<8x1xf32>
    %140 = arith.divf %138, %139 : vector<8x1xf32>
    %141 = vector.broadcast %133 : vector<8x1xf32> to vector<8x32xf32>
    %142 = arith.subf %129, %141 : vector<8x32xf32>
    %cst_58 = arith.constant 9.99999974E-6 : f32
    %143 = vector.broadcast %cst_58 : f32 to vector<8x1xf32>
    %144 = arith.addf %140, %143 : vector<8x1xf32>
    %145 = math.rsqrt %144 : vector<8x1xf32>
    %146 = vector.broadcast %145 : vector<8x1xf32> to vector<8x32xf32>
    %147 = arith.mulf %142, %146 : vector<8x32xf32>
    %c15 = arith.constant 15 : index
    %c0_59 = arith.constant 0 : index
    %148 = vector.load %arg3[%c15, %c0_59] : memref<24x128xf32, #tpu.memory_space<vmem>>, vector<1x32xf32>
    %149 = vector.broadcast %148 : vector<1x32xf32> to vector<8x32xf32>
    %150 = arith.mulf %147, %149 : vector<8x32xf32>
    %c16 = arith.constant 16 : index
    %c0_60 = arith.constant 0 : index
    %151 = vector.load %arg3[%c16, %c0_60] : memref<24x128xf32, #tpu.memory_space<vmem>>, vector<1x32xf32>
    %152 = vector.broadcast %151 : vector<1x32xf32> to vector<8x32xf32>
    %153 = arith.addf %150, %152 : vector<8x32xf32>
    %c17 = arith.constant 17 : index
    %c0_61 = arith.constant 0 : index
    %154 = vector.load %arg3[%c17, %c0_61] : memref<24x128xf32, #tpu.memory_space<vmem>>, vector<1x64xf32>
    %c496 = arith.constant 496 : index
    %c0_62 = arith.constant 0 : index
    %155 = vector.load %arg2[%c496, %c0_62] : memref<528x128xf32, #tpu.memory_space<vmem>>, vector<32x64xf32>
    %cst_63 = arith.constant dense<0.000000e+00> : vector<8x64xf32>
    %156 = tpu.matmul %153, %155, %cst_63 {dimension_numbers = #tpu.dot_dimension_numbers<[1], [0], [0], [1], [0, 0, 1, 1], [], []>} : vector<8x32xf32>, vector<32x64xf32>, vector<8x64xf32> -> vector<8x64xf32>
    %157 = vector.broadcast %154 : vector<1x64xf32> to vector<8x64xf32>
    %158 = arith.addf %156, %157 : vector<8x64xf32>
    %cst_64 = arith.constant 0.000000e+00 : f32
    %159 = vector.broadcast %cst_64 : f32 to vector<8x48xf32>
    %160 = tpu.concatenate %158, %79, %159 in 1 : vector<8x64xf32>, vector<8x16xf32>, vector<8x48xf32> -> vector<8x128xf32>
    %c0_65 = arith.constant 0 : index
    %c0_66 = arith.constant 0 : index
    %161 = vector.load %arg4[%c0_65, %c0_66] : memref<8x128xf32, #tpu.memory_space<vmem>>, vector<8x128xf32>
    tpu.vector_store %arg4[%c0_65, %c0_66], %160 {strides = array<i32>} : memref<8x128xf32, #tpu.memory_space<vmem>>, vector<8x128xf32>,
    return
  }
  func.func @transform_0(%arg0: i32) -> (i32, i32) {
    %c0_i32 = arith.constant 0 : i32
    %c0_i32_0 = arith.constant 0 : i32
    return %arg0, %c0_i32 : i32, i32
  }
  func.func @transform_1(%arg0: i32) -> (i32, i32) {
    %c0_i32 = arith.constant 0 : i32
    %c0_i32_0 = arith.constant 0 : i32
    %c0_i32_1 = arith.constant 0 : i32
    return %c0_i32, %c0_i32_0 : i32, i32
  }
  func.func @transform_2(%arg0: i32) -> (i32, i32) {
    %c0_i32 = arith.constant 0 : i32
    %c0_i32_0 = arith.constant 0 : i32
    %c0_i32_1 = arith.constant 0 : i32
    return %c0_i32, %c0_i32_0 : i32, i32
  }
  func.func @transform_3(%arg0: i32) -> (i32, i32) {
    %c0_i32 = arith.constant 0 : i32
    %c0_i32_0 = arith.constant 0 : i32
    return %arg0, %c0_i32 : i32, i32
  }
}

</mosaic_0001>

<llo_original>
// kernel: tpu_custom_call.1
$region0: #{tpu_custom_call.1}
  #allocation0 [shape = 'u32[]', space=smem, size = 0x4, offset = 0x4, fixed_abs, tag = 'smem constant byte address 0x4 - core index']
  #allocation1 [shape = 'u32[144,128]{1,0:T(1,128)}', space=vmem, size = 0x12000, scoped, tag = 'internal scratch']
  %s0 = inlined_call_operand.hbm [shape: f32[8,64], index: 0, kind: input, shape index: {}]
  %s1 = inlined_call_operand.hbm [shape: f32[528,128], index: 1, kind: input, shape index: {}]
  %s2 = inlined_call_operand.hbm [shape: f32[24,128], index: 2, kind: input, shape index: {}]
  %s3 = inlined_call_operand.hbm [shape: f32[8,128], index: 3, kind: output, shape index: {}]
  %s4 = sld [smem:[#allocation0]]
  $region34: #{tpu_custom_call.1} parent=0
    _
  %s6 = ssub.s32 1, %s4
  %s7 = scalar_select 0, %s6, %s4
  $region1: #{tpu_custom_call.1} parent=0
    #allocation2 [shape = 'u8[4096]{0}', space=vmem, size = 0x1000, scoped, tag = 'input window, operand 0, single buffered']
    #allocation3 [shape = 's32[1]{0}', space=sflag, size = 0x4, scoped, tag = 'scoped memory for tpu_custom_call.1']
    #allocation4 [shape = 's32[1]{0}', space=sflag, size = 0x4, scoped, tag = 'scoped memory for tpu_custom_call.1']
    #allocation5 [shape = 'u8[270336]{0}', space=vmem, size = 0x42000, scoped, tag = 'input window, operand 1, single buffered']
    #allocation6 [shape = 's32[1]{0}', space=sflag, size = 0x4, scoped, tag = 'scoped memory for tpu_custom_call.1']
    #allocation7 [shape = 'u8[12288]{0}', space=vmem, size = 0x3000, scoped, tag = 'input window, operand 2, single buffered']
    #allocation8 [shape = 'u8[4096]{0}', space=vmem, size = 0x1000, scoped, tag = 'output window, operand 0, single buffered']
    %8 = vsyncpa [#allocation3], 0
    %9 = vsyncpa [#allocation6], 0
    %10 = vsyncpa [#allocation4], 0
    // Predicated region
    $region2: #{tpu_custom_call.1} parent=1 // pred_check
      _
    $region3: #{tpu_custom_call.1} parent=1 // pred_check_branch
      %12 = sbr.rel (0) target = $region5
    $region4: #{tpu_custom_call.1} parent=1 // pred_region
      %s14 = ssub.s32 128, 128
      %15 = vsyncadd [#allocation3], %s14
      %s17 = sshll.u32 [#allocation2], 4
      %s18 = int_to_ptr.vmem [resolvable:$true] %s17
      %20 = dma.hbm_to_vmem [thread:$0]  %s0, 128, %s18, [#allocation3]
    $region5: #{tpu_custom_call.1} parent=1 // pred_fallthru
      _
    // Predicated region
    $region6: #{tpu_custom_call.1} parent=1 // pred_check
      _
    $region7: #{tpu_custom_call.1} parent=1 // pred_check_branch
      %22 = sbr.rel (0) target = $region9
    $region8: #{tpu_custom_call.1} parent=1 // pred_region
      %s24 = ssub.s32 8448, 8448
      %25 = vsyncadd [#allocation6], %s24
      %s26 = sshll.u32 [#allocation5], 4
      %s27 = int_to_ptr.vmem [resolvable:$true] %s26
      %32 = dma.hbm_to_vmem [thread:$0]  %s1, 8448, %s27, [#allocation6], 128, 128, 8
    $region9: #{tpu_custom_call.1} parent=1 // pred_fallthru
      _
    // Predicated region
    $region10: #{tpu_custom_call.1} parent=1 // pred_check
      _
    $region11: #{tpu_custom_call.1} parent=1 // pred_check_branch
      %34 = sbr.rel (0) target = $region13
    $region12: #{tpu_custom_call.1} parent=1 // pred_region
      %s36 = ssub.s32 384, 384
      %37 = vsyncadd [#allocation6], %s36
      %s38 = sshll.u32 [#allocation7], 4
      %s39 = int_to_ptr.vmem [resolvable:$true] %s38
      %44 = dma.hbm_to_vmem [thread:$0]  %s2, 384, %s39, [#allocation6], 128, 128, 8
    $region13: #{tpu_custom_call.1} parent=1 // pred_fallthru
      _
    // Predicated region
    $region14: #{tpu_custom_call.1} parent=1 // pred_check
      _
    $region15: #{tpu_custom_call.1} parent=1 // pred_check_branch
      %46 = sbr.rel (0) target = $region17
    $region16: #{tpu_custom_call.1} parent=1 // pred_region
      %47 = dma.done [#allocation3], 128
    $region17: #{tpu_custom_call.1} parent=1 // pred_fallthru
      _
    // Predicated region
    $region18: #{tpu_custom_call.1} parent=1 // pred_check
      _
    $region19: #{tpu_custom_call.1} parent=1 // pred_check_branch
      %49 = sbr.rel (0) target = $region21
    $region20: #{tpu_custom_call.1} parent=1 // pred_region
      %50 = dma.done [#allocation6], 8448
    $region21: #{tpu_custom_call.1} parent=1 // pred_fallthru
      _
    // Predicated region
    $region22: #{tpu_custom_call.1} parent=1 // pred_check
      _
    $region23: #{tpu_custom_call.1} parent=1 // pred_check_branch
      %52 = sbr.rel (0) target = $region25
    $region24: #{tpu_custom_call.1} parent=1 // pred_region
      %53 = dma.done [#allocation6], 384
    $region25: #{tpu_custom_call.1} parent=1 // pred_fallthru
      _
    %v54 = vld [vmem:[#allocation2] sm:$0xff]
    %v55 = vld [vmem:[#allocation7] sm:$0x1]
    %v56 = vld [vmem:[#allocation5] sm:$0xff]
    %v57 = vld [vmem:[#allocation5 + $0x8] sm:$0xff]
    %v58 = vld [vmem:[#allocation5 + $0x10] sm:$0xff]
    %v59 = vld [vmem:[#allocation5 + $0x18] sm:$0xff]
    %v60 = vld [vmem:[#allocation5 + $0x20] sm:$0xff]
    %v61 = vld [vmem:[#allocation5 + $0x28] sm:$0xff]
    %v62 = vld [vmem:[#allocation5 + $0x30] sm:$0xff]
    %v63 = vld [vmem:[#allocation5 + $0x38] sm:$0xff]
    %v64 = vlaneseq
    %v65 = vshrl.u32 %v64, 7
    %v66 = vsub.s32 0, %v65
    %v67 = vrot.slane %v55, %v66
    %vm68 = vcmask 523264
    %v70 = vsel %vm68, %v54, 0
    %72 = vmatprep.subr.mxu0 0.0
    %73 = vmatpush1.msra.mxu0 %v56
    %74 = vmatprep.subr.mxu0 0.0
    %75 = vmatpush1.msra.mxu0 %v57
    %76 = vmatprep.subr.mxu0 0.0
    %77 = vmatpush1.msra.mxu0 %v58
    %78 = vmatprep.subr.mxu0 0.0
    %79 = vmatpush1.msra.mxu0 %v59
    %80 = vmatprep.subr.mxu0 0.0
    %81 = vmatpush1.msra.mxu0 %v60
    %82 = vmatprep.subr.mxu0 0.0
    %83 = vmatpush1.msra.mxu0 %v61
    %84 = vmatprep.subr.mxu0 0.0
    %85 = vmatpush1.msra.mxu0 %v62
    %86 = vmatprep.subr.mxu0 0.0
    %87 = vmatpush1.msra.mxu0 %v63
    %88 = vmatprep.subr.mxu0 0.0
    %89 = vmatpush1.msra.mxu0 0.0
    %90 = vmatprep.subr.mxu0 0.0
    %91 = vmatpush1.msra.mxu0 0.0
    %92 = vmatprep.subr.mxu0 0.0
    %93 = vmatpush1.msra.mxu0 0.0
    %94 = vmatprep.subr.mxu0 0.0
    %95 = vmatpush1.msra.mxu0 0.0
    %96 = vmatprep.subr.mxu0 0.0
    %97 = vmatpush1.msra.mxu0 0.0
    %98 = vmatprep.subr.mxu0 0.0
    %99 = vmatpush1.msra.mxu0 0.0
    %100 = vmatprep.subr.mxu0 0.0
    %101 = vmatpush1.msra.mxu0 0.0
    %102 = vmatprep.subr.mxu0 0.0
    %103 = vmatpush1.msra.mxu0 0.0
    %104 = vmatprep.subr.mxu0 0.0
    %105 = vmatpush1.msra.mxu0 0.0
    %106 = vmatprep.subr.mxu0 0.0
    %107 = vmatpush1.msra.mxu0 0.0
    %108 = vmatprep.subr.mxu0 0.0
    %109 = vmatpush1.msra.mxu0 0.0
    %110 = vmatprep.subr.mxu0 0.0
    %111 = vmatpush1.msra.mxu0 0.0
    %112 = vmatprep.subr.mxu0 0.0
    %113 = vmatpush1.msra.mxu0 0.0
    %114 = vmatprep.subr.mxu0 0.0
    %115 = vmatpush1.msra.mxu0 0.0
    %116 = vmatprep.subr.mxu0 0.0
    %117 = vmatpush1.msra.mxu0 0.0
    %118 = vmatprep.subr.mxu0 0.0
    %119 = vmatpush1.msra.mxu0 0.0
    %120 = vmatprep.subr.mxu0 0.0
    %121 = vmatpush1.msra.mxu0 0.0
    %122 = vmatprep.subr.mxu0 0.0
    %123 = vmatpush1.msra.mxu0 0.0
    %124 = vmatprep.subr.mxu0 0.0
    %125 = vmatpush1.msra.mxu0 0.0
    %126 = vmatprep.subr.mxu0 0.0
    %127 = vmatpush1.msra.mxu0 0.0
    %128 = vmatprep.subr.mxu0 0.0
    %129 = vmatpush1.msra.mxu0 0.0
    %130 = vmatprep.subr.mxu0 0.0
    %131 = vmatpush1.msra.mxu0 0.0
    %132 = vmatprep.subr.mxu0 0.0
    %133 = vmatpush1.msra.mxu0 0.0
    %134 = vmatprep.subr.mxu0 0.0
    %135 = vmatpush1.msra.mxu0 0.0
    %136 = vmatprep.mubr.f32.mxu0 0.0
    %137 = vmatmul.mubr.f32.gmra.mrb[0].mxu0 %v70
    %v138 = vpop.f32.mrb[0].mxu0
    %v139 = vadd.f32 %v67, %v138
    %v140 = vpop.f32.mrb[0].mxu0
    %141 = vdwg.mxu0
    %v142 = vmax.f32 %v139, 0.0
    %v143 = vld [vmem:[#allocation7 + $0x1] sm:$0x1]
    %v144 = vld [vmem:[#allocation5 + $0x40] sm:$0xff]
    %v145 = vld [vmem:[#allocation5 + $0x48] sm:$0xff]
    %v146 = vld [vmem:[#allocation5 + $0x50] sm:$0xff]
    %v147 = vld [vmem:[#allocation5 + $0x58] sm:$0xff]
    %v148 = vlaneseq
    %v149 = vshrl.u32 %v148, 7
    %v150 = vsub.s32 0, %v149
    %v151 = vrot.slane %v143, %v150
    %vm152 = vcmask 261120
    %v154 = vsel %vm152, %v142, 0
    %156 = vmatprep.subr.mxu0 0.0
    %157 = vmatpush1.msra.mxu0 %v144
    %158 = vmatprep.subr.mxu0 0.0
    %159 = vmatpush1.msra.mxu0 %v145
    %160 = vmatprep.subr.mxu0 0.0
    %161 = vmatpush1.msra.mxu0 %v146
    %162 = vmatprep.subr.mxu0 0.0
    %163 = vmatpush1.msra.mxu0 %v147
    %164 = vmatprep.subr.mxu0 0.0
    %165 = vmatpush1.msra.mxu0 0.0
    %166 = vmatprep.subr.mxu0 0.0
    %167 = vmatpush1.msra.mxu0 0.0
    %168 = vmatprep.subr.mxu0 0.0
    %169 = vmatpush1.msra.mxu0 0.0
    %170 = vmatprep.subr.mxu0 0.0
    %171 = vmatpush1.msra.mxu0 0.0
    %172 = vmatprep.subr.mxu0 0.0
    %173 = vmatpush1.msra.mxu0 0.0
    %174 = vmatprep.subr.mxu0 0.0
    %175 = vmatpush1.msra.mxu0 0.0
    %176 = vmatprep.subr.mxu0 0.0
    %177 = vmatpush1.msra.mxu0 0.0
    %178 = vmatprep.subr.mxu0 0.0
    %179 = vmatpush1.msra.mxu0 0.0
    %180 = vmatprep.subr.mxu0 0.0
    %181 = vmatpush1.msra.mxu0 0.0
    %182 = vmatprep.subr.mxu0 0.0
    %183 = vmatpush1.msra.mxu0 0.0
    %184 = vmatprep.subr.mxu0 0.0
    %185 = vmatpush1.msra.mxu0 0.0
    %186 = vmatprep.subr.mxu0 0.0
    %187 = vmatpush1.msra.mxu0 0.0
    %188 = vmatprep.subr.mxu0 0.0
    %189 = vmatpush1.msra.mxu0 0.0
    %190 = vmatprep.subr.mxu0 0.0
    %191 = vmatpush1.msra.mxu0 0.0
    %192 = vmatprep.subr.mxu0 0.0
    %193 = vmatpush1.msra.mxu0 0.0
    %194 = vmatprep.subr.mxu0 0.0
    %195 = vmatpush1.msra.mxu0 0.0
    %196 = vmatprep.subr.mxu0 0.0
    %197 = vmatpush1.msra.mxu0 0.0
    %198 = vmatprep.subr.mxu0 0.0
    %199 = vmatpush1.msra.mxu0 0.0
    %200 = vmatprep.subr.mxu0 0.0
    %201 = vmatpush1.msra.mxu0 0.0
    %202 = vmatprep.subr.mxu0 0.0
    %203 = vmatpush1.msra.mxu0 0.0
    %204 = vmatprep.subr.mxu0 0.0
    %205 = vmatpush1.msra.mxu0 0.0
    %206 = vmatprep.subr.mxu0 0.0
    %207 = vmatpush1.msra.mxu0 0.0
    %208 = vmatprep.subr.mxu0 0.0
    %209 = vmatpush1.msra.mxu0 0.0
    %210 = vmatprep.subr.mxu0 0.0
    %211 = vmatpush1.msra.mxu0 0.0
    %212 = vmatprep.subr.mxu0 0.0
    %213 = vmatpush1.msra.mxu0 0.0
    %214 = vmatprep.subr.mxu0 0.0
    %215 = vmatpush1.msra.mxu0 0.0
    %216 = vmatprep.subr.mxu0 0.0
    %217 = vmatpush1.msra.mxu0 0.0
    %218 = vmatprep.subr.mxu0 0.0
    %219 = vmatpush1.msra.mxu0 0.0
    %220 = vmatprep.mubr.f32.mxu0 0.0
    %221 = vmatmul.mubr.f32.gmra.mrb[0].mxu0 %v154
    %v222 = vpop.f32.mrb[0].mxu0
    %v223 = vadd.f32 %v151, %v222
    %v224 = vpop.f32.mrb[0].mxu0
    %225 = vdwg.mxu0
    %v226 = vadd.f32 %v142, %v223
    %v227 = vsel %vm152, %v226, 0.0
    %228 = vadd.xlane.f32.xlu0 %v227
    %v229 = vpop.xlane.xlu0 %228
    %v230 = vrcp.pop 32.0
    %v231 = vmul.f32 %v229, %v230
    %v232 = vsub.f32 %v226, %v231
    %v233 = vmul.f32 %v232, %v232
    %v234 = vsel %vm152, %v233, 0.0
    %235 = vadd.xlane.f32.xlu0 %v234
    %v236 = vpop.xlane.xlu0 %235
    %v237 = vmul.f32 %v236, %v230
    %v238 = vadd.f32 %v237, 1e-05
    %v239 = vrsqrt.pop %v238
    %v240 = vmul.f32 %v232, %v239
    %v241 = vld [vmem:[#allocation7 + $0x2] sm:$0x1]
    %v242 = vlaneseq
    %v243 = vshrl.u32 %v242, 7
    %v244 = vsub.s32 0, %v243
    %v245 = vrot.slane %v241, %v244
    %v246 = vmul.f32 %v240, %v245
    %v247 = vld [vmem:[#allocation7 + $0x3] sm:$0x1]
    %v248 = vlaneseq
    %v249 = vshrl.u32 %v248, 7
    %v250 = vsub.s32 0, %v249
    %v251 = vrot.slane %v247, %v250
    %v252 = vadd.f32 %v246, %v251
    %v253 = vld [vmem:[#allocation7 + $0x4] sm:$0x1]
    %v254 = vld [vmem:[#allocation5 + $0x60] sm:$0xff]
    %v255 = vld [vmem:[#allocation5 + $0x68] sm:$0xff]
    %v256 = vld [vmem:[#allocation5 + $0x70] sm:$0xff]
    %v257 = vld [vmem:[#allocation5 + $0x78] sm:$0xff]
    %v258 = vlaneseq
    %v259 = vshrl.u32 %v258, 7
    %v260 = vsub.s32 0, %v259
    %v261 = vrot.slane %v253, %v260
    %v263 = vsel %vm152, %v252, 0
    %265 = vmatprep.subr.mxu0 0.0
    %266 = vmatpush1.msra.mxu0 %v254
    %267 = vmatprep.subr.mxu0 0.0
    %268 = vmatpush1.msra.mxu0 %v255
    %269 = vmatprep.subr.mxu0 0.0
    %270 = vmatpush1.msra.mxu0 %v256
    %271 = vmatprep.subr.mxu0 0.0
    %272 = vmatpush1.msra.mxu0 %v257
    %273 = vmatprep.subr.mxu0 0.0
    %274 = vmatpush1.msra.mxu0 0.0
    %275 = vmatprep.subr.mxu0 0.0
    %276 = vmatpush1.msra.mxu0 0.0
    %277 = vmatprep.subr.mxu0 0.0
    %278 = vmatpush1.msra.mxu0 0.0
    %279 = vmatprep.subr.mxu0 0.0
    %280 = vmatpush1.msra.mxu0 0.0
    %281 = vmatprep.subr.mxu0 0.0
    %282 = vmatpush1.msra.mxu0 0.0
    %283 = vmatprep.subr.mxu0 0.0
    %284 = vmatpush1.msra.mxu0 0.0
    %285 = vmatprep.subr.mxu0 0.0
    %286 = vmatpush1.msra.mxu0 0.0
    %287 = vmatprep.subr.mxu0 0.0
    %288 = vmatpush1.msra.mxu0 0.0
    %289 = vmatprep.subr.mxu0 0.0
    %290 = vmatpush1.msra.mxu0 0.0
    %291 = vmatprep.subr.mxu0 0.0
    %292 = vmatpush1.msra.mxu0 0.0
    %293 = vmatprep.subr.mxu0 0.0
    %294 = vmatpush1.msra.mxu0 0.0
    %295 = vmatprep.subr.mxu0 0.0
    %296 = vmatpush1.msra.mxu0 0.0
    %297 = vmatprep.subr.mxu0 0.0
    %298 = vmatpush1.msra.mxu0 0.0
    %299 = vmatprep.subr.mxu0 0.0
    %300 = vmatpush1.msra.mxu0 0.0
    %301 = vmatprep.subr.mxu0 0.0
    %302 = vmatpush1.msra.mxu0 0.0
    %303 = vmatprep.subr.mxu0 0.0
    %304 = vmatpush1.msra.mxu0 0.0
    %305 = vmatprep.subr.mxu0 0.0
    %306 = vmatpush1.msra.mxu0 0.0
    %307 = vmatprep.subr.mxu0 0.0
    %308 = vmatpush1.msra.mxu0 0.0
    %309 = vmatprep.subr.mxu0 0.0
    %310 = vmatpush1.msra.mxu0 0.0
    %311 = vmatprep.subr.mxu0 0.0
    %312 = vmatpush1.msra.mxu0 0.0
    %313 = vmatprep.subr.mxu0 0.0
    %314 = vmatpush1.msra.mxu0 0.0
    %315 = vmatprep.subr.mxu0 0.0
    %316 = vmatpush1.msra.mxu0 0.0
    %317 = vmatprep.subr.mxu0 0.0
    %318 = vmatpush1.msra.mxu0 0.0
    %319 = vmatprep.subr.mxu0 0.0
    %320 = vmatpush1.msra.mxu0 0.0
    %321 = vmatprep.subr.mxu0 0.0
    %322 = vmatpush1.msra.mxu0 0.0
    %323 = vmatprep.subr.mxu0 0.0
    %324 = vmatpush1.msra.mxu0 0.0
    %325 = vmatprep.subr.mxu0 0.0
    %326 = vmatpush1.msra.mxu0 0.0
    %327 = vmatprep.subr.mxu0 0.0
    %328 = vmatpush1.msra.mxu0 0.0
    %329 = vmatprep.mubr.f32.mxu0 0.0
    %330 = vmatmul.mubr.f32.gmra.mrb[0].mxu0 %v263
    %v331 = vpop.f32.mrb[0].mxu0
    %v332 = vadd.f32 %v261, %v331
    %v333 = vpop.f32.mrb[0].mxu0
    %334 = vdwg.mxu0
    %v335 = vmax.f32 %v332, 0.0
    %v336 = vld [vmem:[#allocation7 + $0x5] sm:$0x1]
    %v337 = vld [vmem:[#allocation5 + $0x80] sm:$0xff]
    %v338 = vld [vmem:[#allocation5 + $0x88] sm:$0xff]
    %v339 = vld [vmem:[#allocation5 + $0x90] sm:$0xff]
    %v340 = vld [vmem:[#allocation5 + $0x98] sm:$0xff]
    %v341 = vld [vmem:[#allocation5 + $0xa0] sm:$0xff]
    %v342 = vld [vmem:[#allocation5 + $0xa8] sm:$0xff]
    %v343 = vld [vmem:[#allocation5 + $0xb0] sm:$0xff]
    %v344 = vld [vmem:[#allocation5 + $0xb8] sm:$0xff]
    %v345 = vld [vmem:[#allocation5 + $0xc0] sm:$0xff]
    %v346 = vld [vmem:[#allocation5 + $0xc8] sm:$0xff]
    %v347 = vld [vmem:[#allocation5 + $0xd0] sm:$0xff]
    %v348 = vld [vmem:[#allocation5 + $0xd8] sm:$0xff]
    %v349 = vld [vmem:[#allocation5 + $0xe0] sm:$0xff]
    %v350 = vld [vmem:[#allocation5 + $0xe8] sm:$0xff]
    %v351 = vld [vmem:[#allocation5 + $0xf0] sm:$0xff]
    %v352 = vld [vmem:[#allocation5 + $0xf8] sm:$0xff]
    %v353 = vlaneseq
    %v354 = vshrl.u32 %v353, 7
    %v355 = vsub.s32 0, %v354
    %v356 = vrot.slane %v336, %v355
    %357 = vmatprep.subr.mxu0 0.0
    %358 = vmatpush1.msra.mxu0 %v337
    %359 = vmatprep.subr.mxu0 0.0
    %360 = vmatpush1.msra.mxu0 %v338
    %361 = vmatprep.subr.mxu0 0.0
    %362 = vmatpush1.msra.mxu0 %v339
    %363 = vmatprep.subr.mxu0 0.0
    %364 = vmatpush1.msra.mxu0 %v340
    %365 = vmatprep.subr.mxu0 0.0
    %366 = vmatpush1.msra.mxu0 %v341
    %367 = vmatprep.subr.mxu0 0.0
    %368 = vmatpush1.msra.mxu0 %v342
    %369 = vmatprep.subr.mxu0 0.0
    %370 = vmatpush1.msra.mxu0 %v343
    %371 = vmatprep.subr.mxu0 0.0
    %372 = vmatpush1.msra.mxu0 %v344
    %373 = vmatprep.subr.mxu0 0.0
    %374 = vmatpush1.msra.mxu0 %v345
    %375 = vmatprep.subr.mxu0 0.0
    %376 = vmatpush1.msra.mxu0 %v346
    %377 = vmatprep.subr.mxu0 0.0
    %378 = vmatpush1.msra.mxu0 %v347
    %379 = vmatprep.subr.mxu0 0.0
    %380 = vmatpush1.msra.mxu0 %v348
    %381 = vmatprep.subr.mxu0 0.0
    %382 = vmatpush1.msra.mxu0 %v349
    %383 = vmatprep.subr.mxu0 0.0
    %384 = vmatpush1.msra.mxu0 %v350
    %385 = vmatprep.subr.mxu0 0.0
    %386 = vmatpush1.msra.mxu0 %v351
    %387 = vmatprep.subr.mxu0 0.0
    %388 = vmatpush1.msra.mxu0 %v352
    %389 = vmatprep.subr.mxu0 0.0
    %390 = vmatpush1.msra.mxu0 0.0
    %391 = vmatprep.subr.mxu0 0.0
    %392 = vmatpush1.msra.mxu0 0.0
    %393 = vmatprep.subr.mxu0 0.0
    %394 = vmatpush1.msra.mxu0 0.0
    %395 = vmatprep.subr.mxu0 0.0
    %396 = vmatpush1.msra.mxu0 0.0
    %397 = vmatprep.subr.mxu0 0.0
    %398 = vmatpush1.msra.mxu0 0.0
    %399 = vmatprep.subr.mxu0 0.0
    %400 = vmatpush1.msra.mxu0 0.0
    %401 = vmatprep.subr.mxu0 0.0
    %402 = vmatpush1.msra.mxu0 0.0
    %403 = vmatprep.subr.mxu0 0.0
    %404 = vmatpush1.msra.mxu0 0.0
    %405 = vmatprep.subr.mxu0 0.0
    %406 = vmatpush1.msra.mxu0 0.0
    %407 = vmatprep.subr.mxu0 0.0
    %408 = vmatpush1.msra.mxu0 0.0
    %409 = vmatprep.subr.mxu0 0.0
    %410 = vmatpush1.msra.mxu0 0.0
    %411 = vmatprep.subr.mxu0 0.0
    %412 = vmatpush1.msra.mxu0 0.0
    %413 = vmatprep.subr.mxu0 0.0
    %414 = vmatpush1.msra.mxu0 0.0
    %415 = vmatprep.subr.mxu0 0.0
    %416 = vmatpush1.msra.mxu0 0.0
    %417 = vmatprep.subr.mxu0 0.0
    %418 = vmatpush1.msra.mxu0 0.0
    %419 = vmatprep.subr.mxu0 0.0
    %420 = vmatpush1.msra.mxu0 0.0
    %421 = vmatprep.mubr.f32.mxu0 0.0
    %422 = vmatmul.mubr.f32.gmra.mrb[0].mxu0 %v335
    %v423 = vpop.f32.mrb[0].mxu0
    %v424 = vadd.f32 %v356, %v423
    %v425 = vpop.f32.mrb[0].mxu0
    %426 = vdwg.mxu0
    %v427 = vadd.f32 %v252, %v424
    %v428 = vsel %vm152, %v427, 0.0
    %429 = vadd.xlane.f32.xlu0 %v428
    %v430 = vpop.xlane.xlu0 %429
    %v431 = vmul.f32 %v430, %v230
    %v432 = vsub.f32 %v427, %v431
    %v433 = vmul.f32 %v432, %v432
    %v434 = vsel %vm152, %v433, 0.0
    %435 = vadd.xlane.f32.xlu0 %v434
    %v436 = vpop.xlane.xlu0 %435
    %v437 = vmul.f32 %v436, %v230
    %v438 = vadd.f32 %v437, 1e-05
    %v439 = vrsqrt.pop %v438
    %v440 = vmul.f32 %v432, %v439
    %v441 = vld [vmem:[#allocation7 + $0x6] sm:$0x1]
    %v442 = vlaneseq
    %v443 = vshrl.u32 %v442, 7
    %v444 = vsub.s32 0, %v443
    %v445 = vrot.slane %v441, %v444
    %v446 = vmul.f32 %v440, %v445
    %v447 = vld [vmem:[#allocation7 + $0x7] sm:$0x1]
    %v448 = vlaneseq
    %v449 = vshrl.u32 %v448, 7
    %v450 = vsub.s32 0, %v449
    %v451 = vrot.slane %v447, %v450
    %v452 = vadd.f32 %v446, %v451
    %v453 = vld [vmem:[#allocation7 + $0x8] sm:$0x1]
    %v454 = vld [vmem:[#allocation5 + $0x100] sm:$0xff]
    %v455 = vld [vmem:[#allocation5 + $0x108] sm:$0xff]
    %v456 = vld [vmem:[#allocation5 + $0x110] sm:$0xff]
    %v457 = vld [vmem:[#allocation5 + $0x118] sm:$0xff]
    %v458 = vlaneseq
    %v459 = vshrl.u32 %v458, 7
    %v460 = vsub.s32 0, %v459
    %v461 = vrot.slane %v453, %v460
    %v463 = vsel %vm152, %v452, 0
    %465 = vmatprep.subr.mxu0 0.0
    %466 = vmatpush1.msra.mxu0 %v454
    %467 = vmatprep.subr.mxu0 0.0
    %468 = vmatpush1.msra.mxu0 %v455
    %469 = vmatprep.subr.mxu0 0.0
    %470 = vmatpush1.msra.mxu0 %v456
    %471 = vmatprep.subr.mxu0 0.0
    %472 = vmatpush1.msra.mxu0 %v457
    %473 = vmatprep.subr.mxu0 0.0
    %474 = vmatpush1.msra.mxu0 0.0
    %475 = vmatprep.subr.mxu0 0.0
    %476 = vmatpush1.msra.mxu0 0.0
    %477 = vmatprep.subr.mxu0 0.0
    %478 = vmatpush1.msra.mxu0 0.0
    %479 = vmatprep.subr.mxu0 0.0
    %480 = vmatpush1.msra.mxu0 0.0
    %481 = vmatprep.subr.mxu0 0.0
    %482 = vmatpush1.msra.mxu0 0.0
    %483 = vmatprep.subr.mxu0 0.0
    %484 = vmatpush1.msra.mxu0 0.0
    %485 = vmatprep.subr.mxu0 0.0
    %486 = vmatpush1.msra.mxu0 0.0
    %487 = vmatprep.subr.mxu0 0.0
    %488 = vmatpush1.msra.mxu0 0.0
    %489 = vmatprep.subr.mxu0 0.0
    %490 = vmatpush1.msra.mxu0 0.0
    %491 = vmatprep.subr.mxu0 0.0
    %492 = vmatpush1.msra.mxu0 0.0
    %493 = vmatprep.subr.mxu0 0.0
    %494 = vmatpush1.msra.mxu0 0.0
    %495 = vmatprep.subr.mxu0 0.0
    %496 = vmatpush1.msra.mxu0 0.0
    %497 = vmatprep.subr.mxu0 0.0
    %498 = vmatpush1.msra.mxu0 0.0
    %499 = vmatprep.subr.mxu0 0.0
    %500 = vmatpush1.msra.mxu0 0.0
    %501 = vmatprep.subr.mxu0 0.0
    %502 = vmatpush1.msra.mxu0 0.0
    %503 = vmatprep.subr.mxu0 0.0
    %504 = vmatpush1.msra.mxu0 0.0
    %505 = vmatprep.subr.mxu0 0.0
    %506 = vmatpush1.msra.mxu0 0.0
    %507 = vmatprep.subr.mxu0 0.0
    %508 = vmatpush1.msra.mxu0 0.0
    %509 = vmatprep.subr.mxu0 0.0
    %510 = vmatpush1.msra.mxu0 0.0
    %511 = vmatprep.subr.mxu0 0.0
    %512 = vmatpush1.msra.mxu0 0.0
    %513 = vmatprep.subr.mxu0 0.0
    %514 = vmatpush1.msra.mxu0 0.0
    %515 = vmatprep.subr.mxu0 0.0
    %516 = vmatpush1.msra.mxu0 0.0
    %517 = vmatprep.subr.mxu0 0.0
    %518 = vmatpush1.msra.mxu0 0.0
    %519 = vmatprep.subr.mxu0 0.0
    %520 = vmatpush1.msra.mxu0 0.0
    %521 = vmatprep.subr.mxu0 0.0
    %522 = vmatpush1.msra.mxu0 0.0
    %523 = vmatprep.subr.mxu0 0.0
    %524 = vmatpush1.msra.mxu0 0.0
    %525 = vmatprep.subr.mxu0 0.0
    %526 = vmatpush1.msra.mxu0 0.0
    %527 = vmatprep.subr.mxu0 0.0
    %528 = vmatpush1.msra.mxu0 0.0
    %529 = vmatprep.mubr.f32.mxu0 0.0
    %530 = vmatmul.mubr.f32.gmra.mrb[0].mxu0 %v463
    %v531 = vpop.f32.mrb[0].mxu0
    %v532 = vadd.f32 %v461, %v531
    %v533 = vpop.f32.mrb[0].mxu0
    %534 = vdwg.mxu0
    %v535 = vld [vmem:[#allocation7 + $0x9] sm:$0x1]
    %v536 = vld [vmem:[#allocation5 + $0x120] sm:$0xff]
    %v537 = vld [vmem:[#allocation5 + $0x128] sm:$0xff]
    %v538 = vlaneseq
    %v539 = vshrl.u32 %v538, 7
    %v540 = vsub.s32 0, %v539
    %v541 = vrot.slane %v535, %v540
    %vm542 = vcmask 130048
    %v544 = vsel %vm542, %v532, 0
    %546 = vmatprep.subr.mxu0 0.0
    %547 = vmatpush1.msra.mxu0 %v536
    %548 = vmatprep.subr.mxu0 0.0
    %549 = vmatpush1.msra.mxu0 %v537
    %550 = vmatprep.subr.mxu0 0.0
    %551 = vmatpush1.msra.mxu0 0.0
    %552 = vmatprep.subr.mxu0 0.0
    %553 = vmatpush1.msra.mxu0 0.0
    %554 = vmatprep.subr.mxu0 0.0
    %555 = vmatpush1.msra.mxu0 0.0
    %556 = vmatprep.subr.mxu0 0.0
    %557 = vmatpush1.msra.mxu0 0.0
    %558 = vmatprep.subr.mxu0 0.0
    %559 = vmatpush1.msra.mxu0 0.0
    %560 = vmatprep.subr.mxu0 0.0
    %561 = vmatpush1.msra.mxu0 0.0
    %562 = vmatprep.subr.mxu0 0.0
    %563 = vmatpush1.msra.mxu0 0.0
    %564 = vmatprep.subr.mxu0 0.0
    %565 = vmatpush1.msra.mxu0 0.0
    %566 = vmatprep.subr.mxu0 0.0
    %567 = vmatpush1.msra.mxu0 0.0
    %568 = vmatprep.subr.mxu0 0.0
    %569 = vmatpush1.msra.mxu0 0.0
    %570 = vmatprep.subr.mxu0 0.0
    %571 = vmatpush1.msra.mxu0 0.0
    %572 = vmatprep.subr.mxu0 0.0
    %573 = vmatpush1.msra.mxu0 0.0
    %574 = vmatprep.subr.mxu0 0.0
    %575 = vmatpush1.msra.mxu0 0.0
    %576 = vmatprep.subr.mxu0 0.0
    %577 = vmatpush1.msra.mxu0 0.0
    %578 = vmatprep.subr.mxu0 0.0
    %579 = vmatpush1.msra.mxu0 0.0
    %580 = vmatprep.subr.mxu0 0.0
    %581 = vmatpush1.msra.mxu0 0.0
    %582 = vmatprep.subr.mxu0 0.0
    %583 = vmatpush1.msra.mxu0 0.0
    %584 = vmatprep.subr.mxu0 0.0
    %585 = vmatpush1.msra.mxu0 0.0
    %586 = vmatprep.subr.mxu0 0.0
    %587 = vmatpush1.msra.mxu0 0.0
    %588 = vmatprep.subr.mxu0 0.0
    %589 = vmatpush1.msra.mxu0 0.0
    %590 = vmatprep.subr.mxu0 0.0
    %591 = vmatpush1.msra.mxu0 0.0
    %592 = vmatprep.subr.mxu0 0.0
    %593 = vmatpush1.msra.mxu0 0.0
    %594 = vmatprep.subr.mxu0 0.0
    %595 = vmatpush1.msra.mxu0 0.0
    %596 = vmatprep.subr.mxu0 0.0
    %597 = vmatpush1.msra.mxu0 0.0
    %598 = vmatprep.subr.mxu0 0.0
    %599 = vmatpush1.msra.mxu0 0.0
    %600 = vmatprep.subr.mxu0 0.0
    %601 = vmatpush1.msra.mxu0 0.0
    %602 = vmatprep.subr.mxu0 0.0
    %603 = vmatpush1.msra.mxu0 0.0
    %604 = vmatprep.subr.mxu0 0.0
    %605 = vmatpush1.msra.mxu0 0.0
    %606 = vmatprep.subr.mxu0 0.0
    %607 = vmatpush1.msra.mxu0 0.0
    %608 = vmatprep.subr.mxu0 0.0
    %609 = vmatpush1.msra.mxu0 0.0
    %610 = vmatprep.mubr.f32.mxu0 0.0
    %611 = vmatmul.mubr.f32.gmra.mrb[0].mxu0 %v544
    %v612 = vpop.f32.mrb[0].mxu0
    %v613 = vadd.f32 %v541, %v612
    %v614 = vpop.f32.mrb[0].mxu0
    %615 = vdwg.mxu0
    %v616 = vmax.f32 %v613, 0.0
    %v617 = vld [vmem:[#allocation7 + $0xa] sm:$0x1]
    %v618 = vld [vmem:[#allocation5 + $0x130] sm:$0xff]
    %v619 = vld [vmem:[#allocation5 + $0x138] sm:$0xff]
    %v620 = vld [vmem:[#allocation5 + $0x140] sm:$0xff]
    %v621 = vld [vmem:[#allocation5 + $0x148] sm:$0xff]
    %v622 = vlaneseq
    %v623 = vshrl.u32 %v622, 7
    %v624 = vsub.s32 0, %v623
    %v625 = vrot.slane %v617, %v624
    %v627 = vsel %vm152, %v616, 0
    %629 = vmatprep.subr.mxu0 0.0
    %630 = vmatpush1.msra.mxu0 %v618
    %631 = vmatprep.subr.mxu0 0.0
    %632 = vmatpush1.msra.mxu0 %v619
    %633 = vmatprep.subr.mxu0 0.0
    %634 = vmatpush1.msra.mxu0 %v620
    %635 = vmatprep.subr.mxu0 0.0
    %636 = vmatpush1.msra.mxu0 %v621
    %637 = vmatprep.subr.mxu0 0.0
    %638 = vmatpush1.msra.mxu0 0.0
    %639 = vmatprep.subr.mxu0 0.0
    %640 = vmatpush1.msra.mxu0 0.0
    %641 = vmatprep.subr.mxu0 0.0
    %642 = vmatpush1.msra.mxu0 0.0
    %643 = vmatprep.subr.mxu0 0.0
    %644 = vmatpush1.msra.mxu0 0.0
    %645 = vmatprep.subr.mxu0 0.0
    %646 = vmatpush1.msra.mxu0 0.0
    %647 = vmatprep.subr.mxu0 0.0
    %648 = vmatpush1.msra.mxu0 0.0
    %649 = vmatprep.subr.mxu0 0.0
    %650 = vmatpush1.msra.mxu0 0.0
    %651 = vmatprep.subr.mxu0 0.0
    %652 = vmatpush1.msra.mxu0 0.0
    %653 = vmatprep.subr.mxu0 0.0
    %654 = vmatpush1.msra.mxu0 0.0
    %655 = vmatprep.subr.mxu0 0.0
    %656 = vmatpush1.msra.mxu0 0.0
    %657 = vmatprep.subr.mxu0 0.0
    %658 = vmatpush1.msra.mxu0 0.0
    %659 = vmatprep.subr.mxu0 0.0
    %660 = vmatpush1.msra.mxu0 0.0
    %661 = vmatprep.subr.mxu0 0.0
    %662 = vmatpush1.msra.mxu0 0.0
    %663 = vmatprep.subr.mxu0 0.0
    %664 = vmatpush1.msra.mxu0 0.0
    %665 = vmatprep.subr.mxu0 0.0
    %666 = vmatpush1.msra.mxu0 0.0
    %667 = vmatprep.subr.mxu0 0.0
    %668 = vmatpush1.msra.mxu0 0.0
    %669 = vmatprep.subr.mxu0 0.0
    %670 = vmatpush1.msra.mxu0 0.0
    %671 = vmatprep.subr.mxu0 0.0
    %672 = vmatpush1.msra.mxu0 0.0
    %673 = vmatprep.subr.mxu0 0.0
    %674 = vmatpush1.msra.mxu0 0.0
    %675 = vmatprep.subr.mxu0 0.0
    %676 = vmatpush1.msra.mxu0 0.0
    %677 = vmatprep.subr.mxu0 0.0
    %678 = vmatpush1.msra.mxu0 0.0
    %679 = vmatprep.subr.mxu0 0.0
    %680 = vmatpush1.msra.mxu0 0.0
    %681 = vmatprep.subr.mxu0 0.0
    %682 = vmatpush1.msra.mxu0 0.0
    %683 = vmatprep.subr.mxu0 0.0
    %684 = vmatpush1.msra.mxu0 0.0
    %685 = vmatprep.subr.mxu0 0.0
    %686 = vmatpush1.msra.mxu0 0.0
    %687 = vmatprep.subr.mxu0 0.0
    %688 = vmatpush1.msra.mxu0 0.0
    %689 = vmatprep.subr.mxu0 0.0
    %690 = vmatpush1.msra.mxu0 0.0
    %691 = vmatprep.subr.mxu0 0.0
    %692 = vmatpush1.msra.mxu0 0.0
    %693 = vmatprep.mubr.f32.mxu0 0.0
    %694 = vmatmul.mubr.f32.gmra.mrb[0].mxu0 %v627
    %v695 = vpop.f32.mrb[0].mxu0
    %v696 = vadd.f32 %v625, %v695
    %v697 = vpop.f32.mrb[0].mxu0
    %698 = vdwg.mxu0
    %v699 = vadd.f32 %v616, %v696
    %v700 = vsel %vm152, %v699, 0.0
    %701 = vadd.xlane.f32.xlu0 %v700
    %v702 = vpop.xlane.xlu0 %701
    %v703 = vmul.f32 %v702, %v230
    %v704 = vsub.f32 %v699, %v703
    %v705 = vmul.f32 %v704, %v704
    %v706 = vsel %vm152, %v705, 0.0
    %707 = vadd.xlane.f32.xlu0 %v706
    %v708 = vpop.xlane.xlu0 %707
    %v709 = vmul.f32 %v708, %v230
    %v710 = vadd.f32 %v709, 1e-05
    %v711 = vrsqrt.pop %v710
    %v712 = vmul.f32 %v704, %v711
    %v713 = vld [vmem:[#allocation7 + $0xb] sm:$0x1]
    %v714 = vlaneseq
    %v715 = vshrl.u32 %v714, 7
    %v716 = vsub.s32 0, %v715
    %v717 = vrot.slane %v713, %v716
    %v718 = vmul.f32 %v712, %v717
    %v719 = vld [vmem:[#allocation7 + $0xc] sm:$0x1]
    %v720 = vlaneseq
    %v721 = vshrl.u32 %v720, 7
    %v722 = vsub.s32 0, %v721
    %v723 = vrot.slane %v719, %v722
    %v724 = vadd.f32 %v718, %v723
    %v725 = vld [vmem:[#allocation7 + $0xd] sm:$0x1]
    %v726 = vld [vmem:[#allocation5 + $0x150] sm:$0xff]
    %v727 = vld [vmem:[#allocation5 + $0x158] sm:$0xff]
    %v728 = vld [vmem:[#allocation5 + $0x160] sm:$0xff]
    %v729 = vld [vmem:[#allocation5 + $0x168] sm:$0xff]
    %v730 = vlaneseq
    %v731 = vshrl.u32 %v730, 7
    %v732 = vsub.s32 0, %v731
    %v733 = vrot.slane %v725, %v732
    %v735 = vsel %vm152, %v724, 0
    %737 = vmatprep.subr.mxu0 0.0
    %738 = vmatpush1.msra.mxu0 %v726
    %739 = vmatprep.subr.mxu0 0.0
    %740 = vmatpush1.msra.mxu0 %v727
    %741 = vmatprep.subr.mxu0 0.0
    %742 = vmatpush1.msra.mxu0 %v728
    %743 = vmatprep.subr.mxu0 0.0
    %744 = vmatpush1.msra.mxu0 %v729
    %745 = vmatprep.subr.mxu0 0.0
    %746 = vmatpush1.msra.mxu0 0.0
    %747 = vmatprep.subr.mxu0 0.0
    %748 = vmatpush1.msra.mxu0 0.0
    %749 = vmatprep.subr.mxu0 0.0
    %750 = vmatpush1.msra.mxu0 0.0
    %751 = vmatprep.subr.mxu0 0.0
    %752 = vmatpush1.msra.mxu0 0.0
    %753 = vmatprep.subr.mxu0 0.0
    %754 = vmatpush1.msra.mxu0 0.0
    %755 = vmatprep.subr.mxu0 0.0
    %756 = vmatpush1.msra.mxu0 0.0
    %757 = vmatprep.subr.mxu0 0.0
    %758 = vmatpush1.msra.mxu0 0.0
    %759 = vmatprep.subr.mxu0 0.0
    %760 = vmatpush1.msra.mxu0 0.0
    %761 = vmatprep.subr.mxu0 0.0
    %762 = vmatpush1.msra.mxu0 0.0
    %763 = vmatprep.subr.mxu0 0.0
    %764 = vmatpush1.msra.mxu0 0.0
    %765 = vmatprep.subr.mxu0 0.0
    %766 = vmatpush1.msra.mxu0 0.0
    %767 = vmatprep.subr.mxu0 0.0
    %768 = vmatpush1.msra.mxu0 0.0
    %769 = vmatprep.subr.mxu0 0.0
    %770 = vmatpush1.msra.mxu0 0.0
    %771 = vmatprep.subr.mxu0 0.0
    %772 = vmatpush1.msra.mxu0 0.0
    %773 = vmatprep.subr.mxu0 0.0
    %774 = vmatpush1.msra.mxu0 0.0
    %775 = vmatprep.subr.mxu0 0.0
    %776 = vmatpush1.msra.mxu0 0.0
    %777 = vmatprep.subr.mxu0 0.0
    %778 = vmatpush1.msra.mxu0 0.0
    %779 = vmatprep.subr.mxu0 0.0
    %780 = vmatpush1.msra.mxu0 0.0
    %781 = vmatprep.subr.mxu0 0.0
    %782 = vmatpush1.msra.mxu0 0.0
    %783 = vmatprep.subr.mxu0 0.0
    %784 = vmatpush1.msra.mxu0 0.0
    %785 = vmatprep.subr.mxu0 0.0
    %786 = vmatpush1.msra.mxu0 0.0
    %787 = vmatprep.subr.mxu0 0.0
    %788 = vmatpush1.msra.mxu0 0.0
    %789 = vmatprep.subr.mxu0 0.0
    %790 = vmatpush1.msra.mxu0 0.0
    %791 = vmatprep.subr.mxu0 0.0
    %792 = vmatpush1.msra.mxu0 0.0
    %793 = vmatprep.subr.mxu0 0.0
    %794 = vmatpush1.msra.mxu0 0.0
    %795 = vmatprep.subr.mxu0 0.0
    %796 = vmatpush1.msra.mxu0 0.0
    %797 = vmatprep.subr.mxu0 0.0
    %798 = vmatpush1.msra.mxu0 0.0
    %799 = vmatprep.subr.mxu0 0.0
    %800 = vmatpush1.msra.mxu0 0.0
    %801 = vmatprep.mubr.f32.mxu0 0.0
    %802 = vmatmul.mubr.f32.gmra.mrb[0].mxu0 %v735
    %v803 = vpop.f32.mrb[0].mxu0
    %v804 = vadd.f32 %v733, %v803
    %v805 = vpop.f32.mrb[0].mxu0
    %806 = vdwg.mxu0
    %v807 = vmax.f32 %v804, 0.0
    %v808 = vld [vmem:[#allocation7 + $0xe] sm:$0x1]
    %v809 = vld [vmem:[#allocation5 + $0x170] sm:$0xff]
    %v810 = vld [vmem:[#allocation5 + $0x178] sm:$0xff]
    %v811 = vld [vmem:[#allocation5 + $0x180] sm:$0xff]
    %v812 = vld [vmem:[#allocation5 + $0x188] sm:$0xff]
    %v813 = vld [vmem:[#allocation5 + $0x190] sm:$0xff]
    %v814 = vld [vmem:[#allocation5 + $0x198] sm:$0xff]
    %v815 = vld [vmem:[#allocation5 + $0x1a0] sm:$0xff]
    %v816 = vld [vmem:[#allocation5 + $0x1a8] sm:$0xff]
    %v817 = vld [vmem:[#allocation5 + $0x1b0] sm:$0xff]
    %v818 = vld [vmem:[#allocation5 + $0x1b8] sm:$0xff]
    %v819 = vld [vmem:[#allocation5 + $0x1c0] sm:$0xff]
    %v820 = vld [vmem:[#allocation5 + $0x1c8] sm:$0xff]
    %v821 = vld [vmem:[#allocation5 + $0x1d0] sm:$0xff]
    %v822 = vld [vmem:[#allocation5 + $0x1d8] sm:$0xff]
    %v823 = vld [vmem:[#allocation5 + $0x1e0] sm:$0xff]
    %v824 = vld [vmem:[#allocation5 + $0x1e8] sm:$0xff]
    %v825 = vlaneseq
    %v826 = vshrl.u32 %v825, 7
    %v827 = vsub.s32 0, %v826
    %v828 = vrot.slane %v808, %v827
    %829 = vmatprep.subr.mxu0 0.0
    %830 = vmatpush1.msra.mxu0 %v809
    %831 = vmatprep.subr.mxu0 0.0
    %832 = vmatpush1.msra.mxu0 %v810
    %833 = vmatprep.subr.mxu0 0.0
    %834 = vmatpush1.msra.mxu0 %v811
    %835 = vmatprep.subr.mxu0 0.0
    %836 = vmatpush1.msra.mxu0 %v812
    %837 = vmatprep.subr.mxu0 0.0
    %838 = vmatpush1.msra.mxu0 %v813
    %839 = vmatprep.subr.mxu0 0.0
    %840 = vmatpush1.msra.mxu0 %v814
    %841 = vmatprep.subr.mxu0 0.0
    %842 = vmatpush1.msra.mxu0 %v815
    %843 = vmatprep.subr.mxu0 0.0
    %844 = vmatpush1.msra.mxu0 %v816
    %845 = vmatprep.subr.mxu0 0.0
    %846 = vmatpush1.msra.mxu0 %v817
    %847 = vmatprep.subr.mxu0 0.0
    %848 = vmatpush1.msra.mxu0 %v818
    %849 = vmatprep.subr.mxu0 0.0
    %850 = vmatpush1.msra.mxu0 %v819
    %851 = vmatprep.subr.mxu0 0.0
    %852 = vmatpush1.msra.mxu0 %v820
    %853 = vmatprep.subr.mxu0 0.0
    %854 = vmatpush1.msra.mxu0 %v821
    %855 = vmatprep.subr.mxu0 0.0
    %856 = vmatpush1.msra.mxu0 %v822
    %857 = vmatprep.subr.mxu0 0.0
    %858 = vmatpush1.msra.mxu0 %v823
    %859 = vmatprep.subr.mxu0 0.0
    %860 = vmatpush1.msra.mxu0 %v824
    %861 = vmatprep.subr.mxu0 0.0
    %862 = vmatpush1.msra.mxu0 0.0
    %863 = vmatprep.subr.mxu0 0.0
    %864 = vmatpush1.msra.mxu0 0.0
    %865 = vmatprep.subr.mxu0 0.0
    %866 = vmatpush1.msra.mxu0 0.0
    %867 = vmatprep.subr.mxu0 0.0
    %868 = vmatpush1.msra.mxu0 0.0
    %869 = vmatprep.subr.mxu0 0.0
    %870 = vmatpush1.msra.mxu0 0.0
    %871 = vmatprep.subr.mxu0 0.0
    %872 = vmatpush1.msra.mxu0 0.0
    %873 = vmatprep.subr.mxu0 0.0
    %874 = vmatpush1.msra.mxu0 0.0
    %875 = vmatprep.subr.mxu0 0.0
    %876 = vmatpush1.msra.mxu0 0.0
    %877 = vmatprep.subr.mxu0 0.0
    %878 = vmatpush1.msra.mxu0 0.0
    %879 = vmatprep.subr.mxu0 0.0
    %880 = vmatpush1.msra.mxu0 0.0
    %881 = vmatprep.subr.mxu0 0.0
    %882 = vmatpush1.msra.mxu0 0.0
    %883 = vmatprep.subr.mxu0 0.0
    %884 = vmatpush1.msra.mxu0 0.0
    %885 = vmatprep.subr.mxu0 0.0
    %886 = vmatpush1.msra.mxu0 0.0
    %887 = vmatprep.subr.mxu0 0.0
    %888 = vmatpush1.msra.mxu0 0.0
    %889 = vmatprep.subr.mxu0 0.0
    %890 = vmatpush1.msra.mxu0 0.0
    %891 = vmatprep.subr.mxu0 0.0
    %892 = vmatpush1.msra.mxu0 0.0
    %893 = vmatprep.mubr.f32.mxu0 0.0
    %894 = vmatmul.mubr.f32.gmra.mrb[0].mxu0 %v807
    %v895 = vpop.f32.mrb[0].mxu0
    %v896 = vadd.f32 %v828, %v895
    %v897 = vpop.f32.mrb[0].mxu0
    %898 = vdwg.mxu0
    %v899 = vadd.f32 %v724, %v896
    %v900 = vsel %vm152, %v899, 0.0
    %901 = vadd.xlane.f32.xlu0 %v900
    %v902 = vpop.xlane.xlu0 %901
    %v903 = vmul.f32 %v902, %v230
    %v904 = vsub.f32 %v899, %v903
    %v905 = vmul.f32 %v904, %v904
    %v906 = vsel %vm152, %v905, 0.0
    %907 = vadd.xlane.f32.xlu0 %v906
    %v908 = vpop.xlane.xlu0 %907
    %v909 = vmul.f32 %v908, %v230
    %v910 = vadd.f32 %v909, 1e-05
    %v911 = vrsqrt.pop %v910
    %v912 = vmul.f32 %v904, %v911
    %v913 = vld [vmem:[#allocation7 + $0xf] sm:$0x1]
    %v914 = vlaneseq
    %v915 = vshrl.u32 %v914, 7
    %v916 = vsub.s32 0, %v915
    %v917 = vrot.slane %v913, %v916
    %v918 = vmul.f32 %v912, %v917
    %v919 = vld [vmem:[#allocation7 + $0x10] sm:$0x1]
    %v920 = vlaneseq
    %v921 = vshrl.u32 %v920, 7
    %v922 = vsub.s32 0, %v921
    %v923 = vrot.slane %v919, %v922
    %v924 = vadd.f32 %v918, %v923
    %v925 = vld [vmem:[#allocation7 + $0x11] sm:$0x1]
    %v926 = vld [vmem:[#allocation5 + $0x1f0] sm:$0xff]
    %v927 = vld [vmem:[#allocation5 + $0x1f8] sm:$0xff]
    %v928 = vld [vmem:[#allocation5 + $0x200] sm:$0xff]
    %v929 = vld [vmem:[#allocation5 + $0x208] sm:$0xff]
    %v930 = vlaneseq
    %v931 = vshrl.u32 %v930, 7
    %v932 = vsub.s32 0, %v931
    %v933 = vrot.slane %v925, %v932
    %v935 = vsel %vm152, %v924, 0
    %937 = vmatprep.subr.mxu0 0.0
    %938 = vmatpush1.msra.mxu0 %v926
    %939 = vmatprep.subr.mxu0 0.0
    %940 = vmatpush1.msra.mxu0 %v927
    %941 = vmatprep.subr.mxu0 0.0
    %942 = vmatpush1.msra.mxu0 %v928
    %943 = vmatprep.subr.mxu0 0.0
    %944 = vmatpush1.msra.mxu0 %v929
    %945 = vmatprep.subr.mxu0 0.0
    %946 = vmatpush1.msra.mxu0 0.0
    %947 = vmatprep.subr.mxu0 0.0
    %948 = vmatpush1.msra.mxu0 0.0
    %949 = vmatprep.subr.mxu0 0.0
    %950 = vmatpush1.msra.mxu0 0.0
    %951 = vmatprep.subr.mxu0 0.0
    %952 = vmatpush1.msra.mxu0 0.0
    %953 = vmatprep.subr.mxu0 0.0
    %954 = vmatpush1.msra.mxu0 0.0
    %955 = vmatprep.subr.mxu0 0.0
    %956 = vmatpush1.msra.mxu0 0.0
    %957 = vmatprep.subr.mxu0 0.0
    %958 = vmatpush1.msra.mxu0 0.0
    %959 = vmatprep.subr.mxu0 0.0
    %960 = vmatpush1.msra.mxu0 0.0
    %961 = vmatprep.subr.mxu0 0.0
    %962 = vmatpush1.msra.mxu0 0.0
    %963 = vmatprep.subr.mxu0 0.0
    %964 = vmatpush1.msra.mxu0 0.0
    %965 = vmatprep.subr.mxu0 0.0
    %966 = vmatpush1.msra.mxu0 0.0
    %967 = vmatprep.subr.mxu0 0.0
    %968 = vmatpush1.msra.mxu0 0.0
    %969 = vmatprep.subr.mxu0 0.0
    %970 = vmatpush1.msra.mxu0 0.0
    %971 = vmatprep.subr.mxu0 0.0
    %972 = vmatpush1.msra.mxu0 0.0
    %973 = vmatprep.subr.mxu0 0.0
    %974 = vmatpush1.msra.mxu0 0.0
    %975 = vmatprep.subr.mxu0 0.0
    %976 = vmatpush1.msra.mxu0 0.0
    %977 = vmatprep.subr.mxu0 0.0
    %978 = vmatpush1.msra.mxu0 0.0
    %979 = vmatprep.subr.mxu0 0.0
    %980 = vmatpush1.msra.mxu0 0.0
    %981 = vmatprep.subr.mxu0 0.0
    %982 = vmatpush1.msra.mxu0 0.0
    %983 = vmatprep.subr.mxu0 0.0
    %984 = vmatpush1.msra.mxu0 0.0
    %985 = vmatprep.subr.mxu0 0.0
    %986 = vmatpush1.msra.mxu0 0.0
    %987 = vmatprep.subr.mxu0 0.0
    %988 = vmatpush1.msra.mxu0 0.0
    %989 = vmatprep.subr.mxu0 0.0
    %990 = vmatpush1.msra.mxu0 0.0
    %991 = vmatprep.subr.mxu0 0.0
    %992 = vmatpush1.msra.mxu0 0.0
    %993 = vmatprep.subr.mxu0 0.0
    %994 = vmatpush1.msra.mxu0 0.0
    %995 = vmatprep.subr.mxu0 0.0
    %996 = vmatpush1.msra.mxu0 0.0
    %997 = vmatprep.subr.mxu0 0.0
    %998 = vmatpush1.msra.mxu0 0.0
    %999 = vmatprep.subr.mxu0 0.0
    %1000 = vmatpush1.msra.mxu0 0.0
    %1001 = vmatprep.mubr.f32.mxu0 0.0
    %1002 = vmatmul.mubr.f32.gmra.mrb[0].mxu0 %v935
    %v1003 = vpop.f32.mrb[0].mxu0
    %v1004 = vadd.f32 %v933, %v1003
    %v1005 = vpop.f32.mrb[0].mxu0
    %1006 = vdwg.mxu0
    %1007 = vrot.lane.b32.xlu0 %v532, 64
    %v1008 = vpop.permute.xlu0 %1007
    %v1010 = vsel %vm68, %v1004, %v1008
    %vm1011 = vcmask 654336
    %v1012 = vsel %vm1011, %v1010, 0.0
    %1013 = vst [vmem:[#allocation8] sm:$0xff] %v1012
    // Predicated region
    $region26: #{tpu_custom_call.1} parent=1 // pred_check
      _
    $region27: #{tpu_custom_call.1} parent=1 // pred_check_branch
      %1015 = sbr.rel (0) target = $region29
    $region28: #{tpu_custom_call.1} parent=1 // pred_region
      %s1017 = ssub.s32 128, 128
      %1018 = vsyncadd [#allocation4], %s1017
      %s1020 = sshll.u32 [#allocation8], 4
      %s1021 = int_to_ptr.vmem [resolvable:$true] %s1020
      %1023 = dma.vmem_to_hbm [thread:$0]  %s1021, 128, %s3, [#allocation4]
    $region29: #{tpu_custom_call.1} parent=1 // pred_fallthru
      _
    // Predicated region
    $region30: #{tpu_custom_call.1} parent=1 // pred_check
      _
    $region31: #{tpu_custom_call.1} parent=1 // pred_check_branch
      %1025 = sbr.rel (0) target = $region33
    $region32: #{tpu_custom_call.1} parent=1 // pred_region
      %1026 = dma.done [#allocation4], 128
    $region33: #{tpu_custom_call.1} parent=1 // pred_fallthru
      _
    %1027 = vsyncpa [#allocation3], 1
    %1028 = vsyncpa [#allocation6], 1
    %1029 = vsyncpa [#allocation4], 1

</llo_original>
